<compile_context>
chip_gen: v7x
topology: tpu7x:2x2x1
jax: 0.10.0
libtpu: 0.0.40
codegen_flags: <defaults>
</compile_context>

<pallas_src>
import functools

import jax
import jax.numpy as jnp
from jax.experimental import pallas as pl
from jax.experimental.pallas import tpu as pltpu


def _round_up(x: int, m: int) -> int:
    return (x + m - 1) // m * m


# Per-buffer x-tile + h-slab budget used for tile sizing (keeps the whole kernel
# comfortably inside v7x's 32 MiB scoped-VMEM default even before raising it).
_VMEM_TILE_BUDGET = 36 * 1024 * 1024


def _pooled_connector_kernel(x_ref, wc_ref, bc_ref, o_ref, acc_ref, *,
                             true_t, inv_t, needs_mask, compute_dtype):
    """Grid = (batch_tiles, time_tiles).  Accumulates sum_T relu(x@Wc+bc) per
    batch row in acc_ref (f32) and writes mean at the last time step."""
    t_idx = pl.program_id(1)
    last_t = pl.num_programs(1) - 1

    @pl.when(t_idx == 0)
    def _init():
        acc_ref[...] = jnp.zeros_like(acc_ref)

    x = x_ref[...]                           # (TB, TT, Dp), producer dtype (f32)
    tb, tt, dp = x.shape
    hp = wc_ref.shape[1]
    if x.dtype != compute_dtype:
        x = x.astype(compute_dtype)          # in-register cast; no HBM pre-pass

    # Connector matmul on a (TB*TT, Dp) slab -> fills the MXU M dimension.
    h = jnp.dot(x.reshape(tb * tt, dp), wc_ref[...],
                preferred_element_type=jnp.float32)          # (TB*TT, Hp) f32
    h = jnp.maximum(h + bc_ref[...], 0.0)                    # bias + ReLU in f32
    h3 = h.reshape(tb, tt, hp)

    if needs_mask:
        # Only the last time tile can contain rows beyond T (unspecified data,
        # since features are streamed unpadded).  Select them away there only.
        @pl.when(t_idx != last_t)
        def _full_tile():
            acc_ref[...] += jnp.sum(h3, axis=1)

        @pl.when(t_idx == last_t)
        def _tail_tile():
            t_in_tile = jax.lax.broadcasted_iota(jnp.int32, (tt, hp), 0)
            valid = (t_idx * tt + t_in_tile) < true_t
            acc_ref[...] += jnp.sum(jnp.where(valid[None, :, :], h3, 0.0), axis=1)
    else:
        acc_ref[...] += jnp.sum(h3, axis=1)

    @pl.when(t_idx == last_t)
    def _finalize():
        o_ref[...] = (acc_ref[...] * inv_t).astype(o_ref.dtype)


def model_forward(features, params, *, compute_dtype=jnp.bfloat16, t_tile_max=512):
    """features: (B, T, D). Returns (B, C) float32."""
    B, T, D = features.shape
    wc, bc = params["wc"], params["bc"]      # (D, H), (1, H)
    w1, b1 = params["w1"], params["b1"]      # (H, H), (1, H)
    w2, b2 = params["w2"], params["b2"]      # (H, C), (1, C)
    H = wc.shape[1]

    sub = 8                                  # f32 sublane packing of the x buffer
    Dp = D if D % 128 == 0 else _round_up(D, 128)
    Hp = _round_up(H, 128)

    # Stream features directly.  Pad only when unavoidable:
    #   * D not a multiple of 128 (never for realistic s3prl dims),
    #   * T < 8 (degenerate, keeps time blocks sublane-aligned).
    pad_t = sub - T if T < sub else 0
    pad_d = Dp - D
    if pad_t or pad_d:
        x = jnp.pad(features, ((0, 0), (0, pad_t), (0, pad_d)))
    else:
        x = features
    T_arr = T + pad_t
    x_item = x.dtype.itemsize
    cd_item = jnp.dtype(compute_dtype).itemsize

    # Batch tiling: 8 sublane-aligned rows per tile (full-B block when B < 8).
    TB = B if B < sub else sub

    # Time tiling: largest sublane-aligned tile that (a) does not exceed T,
    # (b) respects t_tile_max, (c) keeps x double-buffer + f32 h-slab in budget.
    t_tile = min(_round_up(max(t_tile_max, 1), sub), (T_arr // sub) * sub)
    per_row_bytes = TB * (2 * Dp * x_item + 2 * Hp * 4)   # x (x2 bufs) + h (+temp)
    rows_budget = max(sub, (_VMEM_TILE_BUDGET // per_row_bytes) // sub * sub)
    t_tile = max(sub, min(t_tile, rows_budget))

    n_b = pl.cdiv(B, TB)
    n_t = pl.cdiv(T_arr, t_tile)
    needs_mask = (n_t * t_tile) != T

    # Weights are tiny: pad H to lane-dense Hp and cast once (no-op-sized cost).
    wc_p = jnp.pad(wc, ((0, Dp - D), (0, Hp - H))).astype(compute_dtype)
    bc_p = jnp.pad(bc, ((0, 0), (0, Hp - H))).astype(jnp.float32)

    kernel = functools.partial(
        _pooled_connector_kernel,
        true_t=T,
        inv_t=1.0 / float(T),
        needs_mask=needs_mask,
        compute_dtype=compute_dtype,
    )

    # Explicit scoped-VMEM limit from the actual footprint (v7x-safe cap).
    est = (2 * TB * t_tile * Dp * x_item      # x tile, double-buffered
           + 2 * Dp * Hp * cd_item            # Wc (resident, 2 buffers)
           + 2 * Hp * 4                       # bc
           + 2 * TB * t_tile * Hp * 4         # f32 h slab + temp headroom
           + 3 * TB * Hp * 4)                 # out block (2 bufs) + acc scratch
    vmem_limit = int(min(max(32 << 20, est * 5 // 4), 64 << 20))

    grid_spec = pltpu.PrefetchScalarGridSpec(
        num_scalar_prefetch=0,
        grid=(n_b, n_t),                                          # reduction axis last
        in_specs=[
            pl.BlockSpec((TB, t_tile, Dp), lambda b, t: (b, t, 0)),   # features tile
            pl.BlockSpec((Dp, Hp), lambda b, t: (0, 0)),              # Wc (resident)
            pl.BlockSpec((1, Hp), lambda b, t: (0, 0)),               # bc
        ],
        out_specs=pl.BlockSpec((TB, Hp), lambda b, t: (b, 0)),        # pooled (lane-dense)
        scratch_shapes=[pltpu.VMEM((TB, Hp), jnp.float32)],           # pooled-sum acc
    )

    pooled_p = pl.pallas_call(
        kernel,
        out_shape=jax.ShapeDtypeStruct((B, Hp), jnp.float32),
        grid_spec=grid_spec,
        compiler_params=pltpu.CompilerParams(
            dimension_semantics=("parallel", "arbitrary"),
            vmem_limit_bytes=vmem_limit),
    )(x, wc_p, bc_p)

    pooled = pooled_p[:, :H]                                      # (B, H) f32

    # Tiny post-pool fc1/fc2 in XLA (per perf review): (B,H)@(H,H) and (B,H)@(H,C).
    cd = compute_dtype
    p1 = jnp.dot(pooled.astype(cd), w1.astype(cd),
                 preferred_element_type=jnp.float32) + b1
    out = jnp.dot(p1.astype(cd), w2.astype(cd),
                  preferred_element_type=jnp.float32) + b2
    return out


def init_params(key, input_dim, hidden_dim, output_class_num):
    """Mirrors nn.Linear default init (uniform +-1/sqrt(fan_in))."""
    ks = jax.random.split(key, 6)
    s_c = 1.0 / jnp.sqrt(input_dim)
    s_h = 1.0 / jnp.sqrt(hidden_dim)
    return {
        "wc": jax.random.uniform(ks[0], (input_dim, hidden_dim), jnp.float32, -s_c, s_c),
        "bc": jax.random.uniform(ks[1], (1, hidden_dim), jnp.float32, -s_c, s_c),
        "w1": jax.random.uniform(ks[2], (hidden_dim, hidden_dim), jnp.float32, -s_h, s_h),
        "b1": jax.random.uniform(ks[3], (1, hidden_dim), jnp.float32, -s_h, s_h),
        "w2": jax.random.uniform(ks[4], (hidden_dim, output_class_num), jnp.float32, -s_h, s_h),
        "b2": jax.random.uniform(ks[5], (1, output_class_num), jnp.float32, -s_h, s_h),
    }


def reference_forward(features, params):
    """Pure f32 reference matching the PyTorch module op-for-op."""
    h = jax.nn.relu(features @ params["wc"] + params["bc"])
    h = h @ params["w1"] + params["b1"]
    pooled = h.mean(axis=1)
    return pooled @ params["w2"] + params["b2"]


def reference_forward_mixed(features, params, compute_dtype):
    """Reference with the same bf16-operand / f32-accumulate structure as the kernel."""
    cd = compute_dtype
    x = features.astype(cd)
    wc = params["wc"].astype(cd)
    w1 = params["w1"].astype(cd)
    w2 = params["w2"].astype(cd)
    h = jnp.maximum(jnp.dot(x, wc, preferred_element_type=jnp.float32) + params["bc"], 0.0)
    pooled = h.mean(axis=1)                                   # f32
    p1 = jnp.dot(pooled.astype(cd), w1, preferred_element_type=jnp.float32) + params["b1"]
    return jnp.dot(p1.astype(cd), w2, preferred_element_type=jnp.float32) + params["b2"]


if __name__ == "__main__":
    key = jax.random.PRNGKey(0)

    def check(feats, params, t_tile_max=512):
        B, C = feats.shape[0], params["w2"].shape[1]
        out_f32 = jax.block_until_ready(
            model_forward(feats, params, compute_dtype=jnp.float32, t_tile_max=t_tile_max))
        ref = reference_forward(feats, params)
        assert out_f32.shape == (B, C), out_f32.shape
        assert jnp.allclose(out_f32, ref, atol=1e-4, rtol=1e-4), \
            float(jnp.max(jnp.abs(out_f32 - ref)))
        out_bf16 = jax.block_until_ready(
            model_forward(feats, params, t_tile_max=t_tile_max))   # default bf16 MXU path
        ref_mix = reference_forward_mixed(feats, params, jnp.bfloat16)
        assert jnp.allclose(out_bf16, ref_mix, atol=2e-3, rtol=2e-3), \
            float(jnp.max(jnp.abs(out_bf16 - ref_mix)))

    # --- Test 1: tiny shapes; B < 8 path; T=12 -> ragged time tile (tail mask) ---
    B, T, D, H, C = 2, 12, 32, 32, 10
    k_x, k_p, key = jax.random.split(key, 3)
    feats = jax.random.normal(k_x, (B, T, D), dtype=jnp.float32)
    check(feats, init_params(k_p, D, H, C))

    # --- Test 2: multi batch tile + multi time tile with ragged tail, unaligned D ---
    B, T, D, H, C = 16, 20, 40, 64, 12
    k_x, k_p, key = jax.random.split(key, 3)
    feats = jax.random.normal(k_x, (B, T, D), dtype=jnp.float32)
    check(feats, init_params(k_p, D, H, C), t_tile_max=8)

    # --- Test 3: 128-aligned D (direct streaming, no wrapper pad), ragged batch ---
    B, T, D, H, C = 9, 24, 128, 128, 5
    k_x, k_p, key = jax.random.split(key, 3)
    feats = jax.random.normal(k_x, (B, T, D), dtype=jnp.float32)
    check(feats, init_params(k_p, D, H, C), t_tile_max=16)

    print("KERNEL_OK")
</pallas_src>

<mosaic_0001>
module attributes {stable_mosaic.version = 11 : i64} {
  func.func @_pooled_connector_kernel(%arg0: i32, %arg1: i32, %arg2: memref<2x8x128xf32, #tpu.memory_space<vmem>>, %arg3: memref<128x128xf32, #tpu.memory_space<vmem>>, %arg4: memref<1x128xf32, #tpu.memory_space<vmem>>, %arg5: memref<2x128xf32, #tpu.memory_space<vmem>>, %arg6: memref<2x128xf32, #tpu.memory_space<vmem>>) attributes {dimension_semantics = [#tpu.dimension_semantics<parallel>, #tpu.dimension_semantics<arbitrary>], iteration_bounds = array<i64: 1, 2>, scalar_prefetch = 0 : i64, scratch_operands = 1 : i64, tpu.core_type = #tpu.core_type<tc>, window_params = [{transform_indices = @transform_0, window_bounds = array<i64: 2, 8, 128>}, {pipeline_mode = #tpu.pipeline_mode<synchronous>, transform_indices = @transform_1, window_bounds = array<i64: 128, 128>}, {pipeline_mode = #tpu.pipeline_mode<synchronous>, transform_indices = @transform_2, window_bounds = array<i64: 1, 128>}, {transform_indices = @transform_3, window_bounds = array<i64: 2, 128>}]} {
    %c0_i32 = arith.constant 0 : i32
    %0 = arith.cmpi eq, %arg1, %c0_i32 : i32
    %1 = arith.extui %0 : i1 to i32
    %c0_i32_0 = arith.constant 0 : i32
    %2 = arith.cmpi ne, %1, %c0_i32_0 : i32
    scf.if %2 {
      %cst_13 = arith.constant 0.000000e+00 : f32
      %22 = vector.broadcast %cst_13 : f32 to vector<2x128xf32>
      %c0_14 = arith.constant 0 : index
      %c0_15 = arith.constant 0 : index
      %23 = vector.load %arg6[%c0_14, %c0_15] : memref<2x128xf32, #tpu.memory_space<vmem>>, vector<2x128xf32>
      tpu.vector_store %arg6[%c0_14, %c0_15], %22 {strides = array<i32>} : memref<2x128xf32, #tpu.memory_space<vmem>>, vector<2x128xf32>,
    } else {
    }
    %c0 = arith.constant 0 : index
    %c0_1 = arith.constant 0 : index
    %c0_2 = arith.constant 0 : index
    %3 = vector.load %arg2[%c0, %c0_1, %c0_2] : memref<2x8x128xf32, #tpu.memory_space<vmem>>, vector<2x8x128xf32>
    %4 = vector.shape_cast %3 : vector<2x8x128xf32> to vector<16x128xf32>
    %c0_3 = arith.constant 0 : index
    %c0_4 = arith.constant 0 : index
    %5 = vector.load %arg3[%c0_3, %c0_4] : memref<128x128xf32, #tpu.memory_space<vmem>>, vector<128x128xf32>
    %cst = arith.constant dense<0.000000e+00> : vector<16x128xf32>
    %6 = tpu.matmul %4, %5, %cst {dimension_numbers = #tpu.dot_dimension_numbers<[1], [0], [0], [1], [0, 0, 1, 1], [], []>} : vector<16x128xf32>, vector<128x128xf32>, vector<16x128xf32> -> vector<16x128xf32>
    %c0_5 = arith.constant 0 : index
    %c0_6 = arith.constant 0 : index
    %7 = vector.load %arg4[%c0_5, %c0_6] : memref<1x128xf32, #tpu.memory_space<vmem>>, vector<1x128xf32>
    %8 = vector.broadcast %7 : vector<1x128xf32> to vector<16x128xf32>
    %9 = arith.addf %6, %8 : vector<16x128xf32>
    %cst_7 = arith.constant 0.000000e+00 : f32
    %10 = vector.broadcast %cst_7 : f32 to vector<16x128xf32>
    %11 = arith.maximumf %9, %10 : vector<16x128xf32>
    %12 = vector.shape_cast %11 : vector<16x128xf32> to vector<2x8x128xf32>
    %c1_i32 = arith.constant 1 : i32
    %13 = arith.cmpi ne, %arg1, %c1_i32 : i32
    %14 = arith.extui %13 : i1 to i32
    %c0_i32_8 = arith.constant 0 : i32
    %15 = arith.cmpi ne, %14, %c0_i32_8 : i32
    scf.if %15 {
      %c0_13 = arith.constant 0 : index
      %c0_14 = arith.constant 0 : index
      %22 = vector.load %arg6[%c0_13, %c0_14] : memref<2x128xf32, #tpu.memory_space<vmem>>, vector<2x128xf32>
      %cst_15 = arith.constant dense<0.000000e+00> : vector<2x128xf32>
      %23 = vector.multi_reduction <add>, %12, %cst_15 [1] : vector<2x8x128xf32> to vector<2x128xf32>
      %24 = arith.addf %22, %23 : vector<2x128xf32>
      %c0_16 = arith.constant 0 : index
      %c0_17 = arith.constant 0 : index
      %25 = vector.load %arg6[%c0_16, %c0_17] : memref<2x128xf32, #tpu.memory_space<vmem>>, vector<2x128xf32>
      tpu.vector_store %arg6[%c0_16, %c0_17], %24 {strides = array<i32>} : memref<2x128xf32, #tpu.memory_space<vmem>>, vector<2x128xf32>,
    } else {
    }
    %c1_i32_9 = arith.constant 1 : i32
    %16 = arith.cmpi eq, %arg1, %c1_i32_9 : i32
    %17 = arith.extui %16 : i1 to i32
    %c0_i32_10 = arith.constant 0 : i32
    %18 = arith.cmpi ne, %17, %c0_i32_10 : i32
    scf.if %18 {
      %22 = tpu.iota {dimensions = array<i32: 0>} : vector<8x128xi32>
      %c8_i32 = arith.constant 8 : i32
      %23 = arith.muli %arg1, %c8_i32 : i32
      %24 = vector.broadcast %23 : i32 to vector<8x128xi32>
      %25 = arith.addi %24, %22 : vector<8x128xi32>
      %c12_i32 = arith.constant 12 : i32
      %26 = vector.broadcast %c12_i32 : i32 to vector<8x128xi32>
      %27 = arith.cmpi slt, %25, %26 : vector<8x128xi32>
      %c0_13 = arith.constant 0 : index
      %c0_14 = arith.constant 0 : index
      %28 = vector.load %arg6[%c0_13, %c0_14] : memref<2x128xf32, #tpu.memory_space<vmem>>, vector<2x128xf32>
      %29 = vector.shape_cast %27 : vector<8x128xi1> to vector<1x8x128xi1>
      %cst_15 = arith.constant 0.000000e+00 : f32
      %30 = vector.shape_cast %29 : vector<1x8x128xi1> to vector<1x8x128xi1>
      %31 = vector.broadcast %30 : vector<1x8x128xi1> to vector<2x8x128xi1>
      %32 = vector.broadcast %cst_15 : f32 to vector<2x8x128xf32>
      %33 = arith.select %31, %12, %32 : vector<2x8x128xi1>, vector<2x8x128xf32>
      %cst_16 = arith.constant dense<0.000000e+00> : vector<2x128xf32>
      %34 = vector.multi_reduction <add>, %33, %cst_16 [1] : vector<2x8x128xf32> to vector<2x128xf32>
      %35 = arith.addf %28, %34 : vector<2x128xf32>
      %c0_17 = arith.constant 0 : index
      %c0_18 = arith.constant 0 : index
      %36 = vector.load %arg6[%c0_17, %c0_18] : memref<2x128xf32, #tpu.memory_space<vmem>>, vector<2x128xf32>
      tpu.vector_store %arg6[%c0_17, %c0_18], %35 {strides = array<i32>} : memref<2x128xf32, #tpu.memory_space<vmem>>, vector<2x128xf32>,
    } else {
    }
    %c1_i32_11 = arith.constant 1 : i32
    %19 = arith.cmpi eq, %arg1, %c1_i32_11 : i32
    %20 = arith.extui %19 : i1 to i32
    %c0_i32_12 = arith.constant 0 : i32
    %21 = arith.cmpi ne, %20, %c0_i32_12 : i32
    scf.if %21 {
      %c0_13 = arith.constant 0 : index
      %c0_14 = arith.constant 0 : index
      %22 = vector.load %arg6[%c0_13, %c0_14] : memref<2x128xf32, #tpu.memory_space<vmem>>, vector<2x128xf32>
      %cst_15 = arith.constant 0.0833333358 : f32
      %23 = vector.broadcast %cst_15 : f32 to vector<2x128xf32>
      %24 = arith.mulf %22, %23 : vector<2x128xf32>
      %c0_16 = arith.constant 0 : index
      %c0_17 = arith.constant 0 : index
      %25 = vector.load %arg5[%c0_16, %c0_17] : memref<2x128xf32, #tpu.memory_space<vmem>>, vector<2x128xf32>
      tpu.vector_store %arg5[%c0_16, %c0_17], %24 {strides = array<i32>} : memref<2x128xf32, #tpu.memory_space<vmem>>, vector<2x128xf32>,
    } else {
    }
    return
  }
  func.func @transform_0(%arg0: i32, %arg1: i32) -> (i32, i32, i32) {
    %c0_i32 = arith.constant 0 : i32
    %c0_i32_0 = arith.constant 0 : i32
    return %arg0, %arg1, %c0_i32 : i32, i32, i32
  }
  func.func @transform_1(%arg0: i32, %arg1: i32) -> (i32, i32) {
    %c0_i32 = arith.constant 0 : i32
    %c0_i32_0 = arith.constant 0 : i32
    %c0_i32_1 = arith.constant 0 : i32
    return %c0_i32, %c0_i32_0 : i32, i32
  }
  func.func @transform_2(%arg0: i32, %arg1: i32) -> (i32, i32) {
    %c0_i32 = arith.constant 0 : i32
    %c0_i32_0 = arith.constant 0 : i32
    %c0_i32_1 = arith.constant 0 : i32
    return %c0_i32, %c0_i32_0 : i32, i32
  }
  func.func @transform_3(%arg0: i32, %arg1: i32) -> (i32, i32) {
    %c0_i32 = arith.constant 0 : i32
    %c0_i32_0 = arith.constant 0 : i32
    return %arg0, %c0_i32 : i32, i32
  }
}

</mosaic_0001>

<llo_original>
// kernel: tpu_custom_call.1
$region0: #{tpu_custom_call.1}
  #allocation0 [shape = 'u32[]', space=smem, size = 0x4, offset = 0x4, fixed_abs, tag = 'smem constant byte address 0x4 - core index']
  #allocation1 [shape = 'u32[144,128]{1,0:T(1,128)}', space=vmem, size = 0x12000, scoped, tag = 'internal scratch']
  #allocation2 [shape = 'f32[2,128]{1,0:T(2,128)}', space=vmem, size = 0x400, scoped, tag = 'scratch operand']
  %s0 = inlined_call_operand.vmem [shape: f32[2,12,128], index: 0, kind: input, shape index: {}]
  %s1 = inlined_call_operand.hbm [shape: f32[128,128], index: 1, kind: input, shape index: {}]
  %s2 = inlined_call_operand.vmem [shape: f32[1,128], index: 2, kind: input, shape index: {}]
  %s3 = inlined_call_operand.hbm [shape: f32[2,128], index: 3, kind: output, shape index: {}]
  %s4 = sld [smem:[#allocation0]]
  $region99: #{tpu_custom_call.1} parent=0
    _
  %s6 = ssub.s32 1, %s4
  %s7 = scalar_select 0, %s6, %s4
  $region1: #{tpu_custom_call.1} parent=0
    #allocation3 [shape = 'u8[16384]{0}', space=vmem, size = 0x4000, scoped, tag = 'input window, operand 0']
    #allocation4 [shape = 'u8[65536]{0}', space=vmem, size = 0x10000, scoped, tag = 'input window, operand 1, single buffered']
    #allocation5 [shape = 's32[2]{0}', space=sflag, size = 0x8, scoped, tag = 'scoped memory for tpu_custom_call.1']
    #allocation6 [shape = 's32[2]{0}', space=sflag, size = 0x8, scoped, tag = 'scoped memory for tpu_custom_call.1']
    #allocation7 [shape = 'u8[1024]{0}', space=vmem, size = 0x400, scoped, tag = 'output window, operand 0, single buffered']
    %8 = vsyncpa [#allocation5], 0
    %9 = vsyncpa [#allocation6], 0
    loop: start=0, step=1, limit=4
    $region2: #{tpu_custom_call.1} parent=1 // loop_pre_header
      _
    $region3: #{tpu_custom_call.1} parent=1 // loop_header
      %s11 = sphi 0, %s15
      %p12 = scmp.ge.s32.totalorder %s11, 4
      %s18 = sphi 0, %s30
      %s19 = sphi 0, %s26
      %s20 = sphi 0, %s18
      %s21 = sphi 0, %s19
      %s22 = sphi 0, %s20
      %s23 = sphi 0, %s21
      %s35 = sphi 0, %s37
      %s38 = sphi 0, %s35
      %s39 = sphi 0, %s38
      %s55 = sphi 0, %s39
      %s59 = sphi 0, %s59
      %s61 = sphi 0, %s59
      %s62 = sphi 0, %s61
      %s76 = sphi 0, %s62
      %s80 = sphi 0, %s80
      %s82 = sphi 0, %s80
      %s83 = sphi 0, %s82
      %s97 = sphi 0, %s83
      %s103 = sphi 0, %s105
      %s106 = sphi 0, %s103
      %s107 = sphi 0, %s106
      %s123 = sphi 0, %s107
    $region4: #{tpu_custom_call.1} parent=1 // loop_header_branch
      %14 = sbr.rel (%p12) target = $region8
    $region5: #{tpu_custom_call.1} parent=1 // loop_body
      %s16 = ssub.s32 %s11, 1
      %s17 = ssub.s32 %s11, 2
      %s24 = sadd.s32 1, %s19
      %p25 = scmp.ge.s32.totalorder %s24, 2
      %s26 = scalar_select %p25, 0, %s24
      %s27 = sadd.s32 1, %s18
      %s28 = scalar_select %p25, %s27, %s18
      %p29 = scmp.ge.s32.totalorder %s28, 1
      %s30 = scalar_select %p29, 0, %s28
      %s31 = ssub.s32 %s18, %s30
      %s32 = ssub.s32 %s19, %s26
      %s33 = sor.u32 %s31, %s32
      %p34 = scmp.eq.s32.totalorder %s33, 0
      %s36 = sadd.s32 %s35, 1
      %s37 = scalar_select %p34, %s35, %s36
      %p40 = pneg %p34
      %p41 = scmp.eq.s32.totalorder %s11, 1
      %p42 = por %p40, %p41
      %p43 = scmp.ne.s32.totalorder %s35, %s38
      %p44 = scmp.eq.s32.totalorder %s11, 0
      %p45 = por %p43, %p44
      %p46 = scmp.ne.s32.totalorder %s35, %s38
      %p47 = scmp.eq.s32.totalorder %s16, 1
      %p48 = por %p46, %p47
      %p49 = scmp.ne.s32.totalorder %s38, %s39
      %p50 = scmp.eq.s32.totalorder %s16, 0
      %p51 = por %p49, %p50
      %p52 = scmp.ne.s32.totalorder %s38, %s39
      %p53 = scmp.eq.s32.totalorder %s17, 1
      %p54 = por %p52, %p53
      %p56 = scmp.ne.s32.totalorder %s39, %s55
      %p57 = scmp.eq.s32.totalorder %s17, 0
      %p58 = por %p56, %p57
      %s60 = sadd.s32 %s59, 1
      %p63 = scmp.eq.s32.totalorder %s11, 1
      %p64 = scmp.ne.s32.totalorder %s59, %s61
      %p65 = scmp.eq.s32.totalorder %s11, 0
      %p66 = por %p64, %p65
      %p67 = scmp.ne.s32.totalorder %s59, %s61
      %p68 = scmp.eq.s32.totalorder %s16, 1
      %p69 = por %p67, %p68
      %p70 = scmp.ne.s32.totalorder %s61, %s62
      %p71 = scmp.eq.s32.totalorder %s16, 0
      %p72 = por %p70, %p71
      %p73 = scmp.ne.s32.totalorder %s61, %s62
      %p74 = scmp.eq.s32.totalorder %s17, 1
      %p75 = por %p73, %p74
      %p77 = scmp.ne.s32.totalorder %s62, %s76
      %p78 = scmp.eq.s32.totalorder %s17, 0
      %p79 = por %p77, %p78
      %s81 = sadd.s32 %s80, 1
      %p84 = scmp.eq.s32.totalorder %s11, 1
      %p85 = scmp.ne.s32.totalorder %s80, %s82
      %p86 = scmp.eq.s32.totalorder %s11, 0
      %p87 = por %p85, %p86
      %p88 = scmp.ne.s32.totalorder %s80, %s82
      %p89 = scmp.eq.s32.totalorder %s16, 1
      %p90 = por %p88, %p89
      %p91 = scmp.ne.s32.totalorder %s82, %s83
      %p92 = scmp.eq.s32.totalorder %s16, 0
      %p93 = por %p91, %p92
      %p94 = scmp.ne.s32.totalorder %s82, %s83
      %p95 = scmp.eq.s32.totalorder %s17, 1
      %p96 = por %p94, %p95
      %p98 = scmp.ne.s32.totalorder %s83, %s97
      %p99 = scmp.eq.s32.totalorder %s17, 0
      %p100 = por %p98, %p99
      %s101 = ssub.s32 %s18, %s30
      %p102 = scmp.eq.s32.totalorder %s101, 0
      %s104 = sadd.s32 %s103, 1
      %s105 = scalar_select %p102, %s103, %s104
      %p108 = pneg %p102
      %p109 = scmp.eq.s32.totalorder %s11, 1
      %p110 = por %p108, %p109
      %p111 = scmp.ne.s32.totalorder %s103, %s106
      %p112 = scmp.eq.s32.totalorder %s11, 0
      %p113 = por %p111, %p112
      %p114 = scmp.ne.s32.totalorder %s103, %s106
      %p115 = scmp.eq.s32.totalorder %s16, 1
      %p116 = por %p114, %p115
      %p117 = scmp.ne.s32.totalorder %s106, %s107
      %p118 = scmp.eq.s32.totalorder %s16, 0
      %p119 = por %p117, %p118
      %p120 = scmp.ne.s32.totalorder %s106, %s107
      %p121 = scmp.eq.s32.totalorder %s17, 1
      %p122 = por %p120, %p121
      %p124 = scmp.ne.s32.totalorder %s107, %s123
      %p125 = scmp.eq.s32.totalorder %s17, 0
      %p126 = por %p124, %p125
      %p127 = scmp.le.s32.totalorder 1, %s11
      %p128 = scmp.lt.s32.totalorder %s11, 3
      %p129 = pnand %p127, %p128
      %p130 = pneg %p129
      // Predicated region
      $region9: #{tpu_custom_call.1} parent=5 // pred_check
        _
      $region10: #{tpu_custom_call.1} parent=5 // pred_check_branch
        %132 = sbr.rel (%p129) target = $region12
      $region11: #{tpu_custom_call.1} parent=5 // pred_region
        %s133 = ssub.s32 %s11, 1
        // Predicated region
        $region13: #{tpu_custom_call.1} parent=11 // pred_check
          %p134 = pneg %p72
        $region14: #{tpu_custom_call.1} parent=11 // pred_check_branch
          %136 = sbr.rel (%p134) target = $region16
        $region15: #{tpu_custom_call.1} parent=11 // pred_region
          %s138 = ssub.s32 2048, 2048
          %139 = vsyncadd [#allocation5], %s138
          %s140 = sshll.u32 [#allocation4], 4
          %s141 = int_to_ptr.vmem [resolvable:$true] %s140
          %146 = dma.hbm_to_vmem [thread:$0]  %s1, 2048, %s141, [#allocation5], 128, 128, 8
        $region16: #{tpu_custom_call.1} parent=11 // pred_fallthru
          _
        // Predicated region
        $region17: #{tpu_custom_call.1} parent=11 // pred_check
          %p147 = pneg %p93
        $region18: #{tpu_custom_call.1} parent=11 // pred_check_branch
          %149 = sbr.rel (%p147) target = $region20
        $region19: #{tpu_custom_call.1} parent=11 // pred_region
          _
        $region20: #{tpu_custom_call.1} parent=11 // pred_fallthru
          _
      $region12: #{tpu_custom_call.1} parent=5 // pred_fallthru
        _
      %p150 = scmp.lt.s32.totalorder %s11, 2
      // Predicated region
      $region21: #{tpu_custom_call.1} parent=5 // pred_check
        %p151 = pneg %p150
      $region22: #{tpu_custom_call.1} parent=5 // pred_check_branch
        %153 = sbr.rel (%p151) target = $region24
      $region23: #{tpu_custom_call.1} parent=5 // pred_region
        // Predicated region
        $region25: #{tpu_custom_call.1} parent=23 // pred_check
          %p154 = pneg %p45
        $region26: #{tpu_custom_call.1} parent=23 // pred_check_branch
          %156 = sbr.rel (%p154) target = $region28
        $region27: #{tpu_custom_call.1} parent=23 // pred_region
          %s157 = sand.u32 %s35, 1
          %s158 = sand.u32 %s35, 1
          %s159 = smul.addr %s158, 16
          %s160 = scalar_lea.vmem [#allocation3], %s159
          %s161 = smul.u32 2, %s18
          %s162 = smul.addr %s161, 2
          %s163 = sadd.s32 %s19, %s162
          %s164 = smul.addr %s163, 8
          %s165 = scalar_lea.vmem %s0, %s164
          // Predicated region
          $region29: #{tpu_custom_call.1} parent=27 // pred_check
            _
          $region30: #{tpu_custom_call.1} parent=27 // pred_check_branch
            %167 = sbr.rel (0) target = $region32
          $region31: #{tpu_custom_call.1} parent=27 // pred_region
            // Predicated region
            $region33: #{tpu_custom_call.1} parent=31 // pred_check
              _
            $region34: #{tpu_custom_call.1} parent=31 // pred_check_branch
              %169 = sbr.rel (0) target = $region36
            $region35: #{tpu_custom_call.1} parent=31 // pred_region
              // Predicated region
              $region48: #{tpu_custom_call.1} parent=35 // pred_check
                _
              $region49: #{tpu_custom_call.1} parent=35 // pred_check_branch
                %186 = sbr.rel (0) target = $region51
              $region50: #{tpu_custom_call.1} parent=35 // pred_region
                loop: start=0, step=1, limit=1
                $region52: #{tpu_custom_call.1} parent=50 // loop_pre_header
                  _
                $region53: #{tpu_custom_call.1} parent=50 // loop_header
                  %s188 = sphi 0, %s192
                  %p189 = scmp.ge.s32.totalorder %s188, 1
                  %s193 = sphi %s165, %s165
                  %s194 = sphi %s160, %s160
                $region54: #{tpu_custom_call.1} parent=50 // loop_header_branch
                  %191 = sbr.rel (%p189) target = $region58
                $region55: #{tpu_custom_call.1} parent=50 // loop_body
                  %v195 = vld [vmem:[%s193] sm:$0xff]
                  %196 = vst [vmem:[%s194] sm:$0xff] %v195
                  %v197 = vld [vmem:[%s193 + $0x10] sm:$0xff]
                  %198 = vst [vmem:[%s194 + $0x8] sm:$0xff] %v197
                $region56: #{tpu_custom_call.1} parent=50 // loop_footer
                  %s192 = sadd.s32 1, %s188
                $region57: #{tpu_custom_call.1} parent=50 // loop_footer_branch
                  %187 = sbr.rel target = $region53
                $region58: #{tpu_custom_call.1} parent=50 // loop_exit
                  _
              $region51: #{tpu_custom_call.1} parent=35 // pred_fallthru
                _
              // Predicated region
              $region59: #{tpu_custom_call.1} parent=35 // pred_check
                _
              $region60: #{tpu_custom_call.1} parent=35 // pred_check_branch
                %200 = sbr.rel target = $region62
              $region61: #{tpu_custom_call.1} parent=35 // pred_region
                _
              $region62: #{tpu_custom_call.1} parent=35 // pred_fallthru
                _
            $region36: #{tpu_custom_call.1} parent=31 // pred_fallthru
              _
            // Predicated region
            $region37: #{tpu_custom_call.1} parent=31 // pred_check
              _
            $region38: #{tpu_custom_call.1} parent=31 // pred_check_branch
              %171 = sbr.rel target = $region40
            $region39: #{tpu_custom_call.1} parent=31 // pred_region
              loop: start=0, step=1, limit=1
              $region41: #{tpu_custom_call.1} parent=39 // loop_pre_header
                _
              $region42: #{tpu_custom_call.1} parent=39 // loop_header
                %s174 = sphi 0, %s178
                %p175 = scmp.ge.s32.totalorder %s174, 1
                %s179 = sphi %s165, %s165
                %s180 = sphi %s160, %s160
              $region43: #{tpu_custom_call.1} parent=39 // loop_header_branch
                %177 = sbr.rel (%p175) target = $region47
              $region44: #{tpu_custom_call.1} parent=39 // loop_body
                %v181 = vld [vmem:[%s179] sm:$0xff]
                %182 = vst [vmem:[%s180] sm:$0xff] %v181
                %v183 = vld [vmem:[%s179 + $0x10] sm:$0xff]
                %184 = vst [vmem:[%s180 + $0x8] sm:$0xff] %v183
              $region45: #{tpu_custom_call.1} parent=39 // loop_footer
                %s178 = sadd.s32 1, %s174
              $region46: #{tpu_custom_call.1} parent=39 // loop_footer_branch
                %173 = sbr.rel target = $region42
              $region47: #{tpu_custom_call.1} parent=39 // loop_exit
                _
            $region40: #{tpu_custom_call.1} parent=31 // pred_fallthru
              _
          $region32: #{tpu_custom_call.1} parent=27 // pred_fallthru
            _
          %201 = vnop
        $region28: #{tpu_custom_call.1} parent=23 // pred_fallthru
          _
      $region24: #{tpu_custom_call.1} parent=5 // pred_fallthru
        _
      %p202 = scmp.le.s32.totalorder 1, %s11
      %p203 = scmp.lt.s32.totalorder %s11, 3
      %p204 = pnand %p202, %p203
      %p205 = pneg %p204
      // Predicated region
      $region63: #{tpu_custom_call.1} parent=5 // pred_check
        _
      $region64: #{tpu_custom_call.1} parent=5 // pred_check_branch
        %207 = sbr.rel (%p204) target = $region66
      $region65: #{tpu_custom_call.1} parent=5 // pred_region
        %s208 = ssub.s32 %s11, 1
        %s209 = sand.u32 %s38, 1
        %s210 = sand.u32 %s38, 1
        %s211 = smul.addr %s210, 16
        %s212 = scalar_lea.vmem [#allocation3], %s211
        // Predicated region
        $region67: #{tpu_custom_call.1} parent=65 // pred_check
          %p213 = pneg %p51
        $region68: #{tpu_custom_call.1} parent=65 // pred_check_branch
          %215 = sbr.rel (%p213) target = $region70
        $region69: #{tpu_custom_call.1} parent=65 // pred_region
          _
        $region70: #{tpu_custom_call.1} parent=65 // pred_fallthru
          _
        // Predicated region
        $region71: #{tpu_custom_call.1} parent=65 // pred_check
          %p216 = pneg %p72
        $region72: #{tpu_custom_call.1} parent=65 // pred_check_branch
          %218 = sbr.rel (%p216) target = $region74
        $region73: #{tpu_custom_call.1} parent=65 // pred_region
          %219 = dma.done [#allocation5], 2048
        $region74: #{tpu_custom_call.1} parent=65 // pred_fallthru
          _
        %s220 = sand.u32 %s38, 1
        %s221 = sand.u32 %s38, 1
        %s222 = smul.addr %s221, 16
        %s223 = scalar_lea.vmem [#allocation3], %s222
        %p224 = pneg %p51
        %p225 = pneg %p48
        %p226 = pneg %p72
        %p227 = pneg %p69
        %p228 = pneg %p93
        %p229 = pneg %p90
        %p230 = pneg %p119
        %p231 = pneg %p116
        %s232 = smul.u32 2, %s20
        %p233 = scmp.eq.s32.totalorder %s21, 0
        // Predicated region
        $region75: #{tpu_custom_call.1} parent=65 // pred_check
          %p234 = pneg %p233
        $region76: #{tpu_custom_call.1} parent=65 // pred_check_branch
          %236 = sbr.rel (%p234) target = $region78
        $region77: #{tpu_custom_call.1} parent=65 // pred_region
          %237 = vst [vmem:[#allocation2] sm:$0x3] 0.0
        $region78: #{tpu_custom_call.1} parent=65 // pred_fallthru
          _
        %v238 = vld [vmem:[%s212] sm:$0xff]
        %v239 = vld [vmem:[%s212 + $0x8] sm:$0xff]
        %v240 = vld [vmem:[#allocation4] sm:$0xff]
        %v241 = vld [vmem:[#allocation4 + $0x8] sm:$0xff]
        %v242 = vld [vmem:[#allocation4 + $0x10] sm:$0xff]
        %v243 = vld [vmem:[#allocation4 + $0x18] sm:$0xff]
        %v244 = vld [vmem:[#allocation4 + $0x20] sm:$0xff]
        %v245 = vld [vmem:[#allocation4 + $0x28] sm:$0xff]
        %v246 = vld [vmem:[#allocation4 + $0x30] sm:$0xff]
        %v247 = vld [vmem:[#allocation4 + $0x38] sm:$0xff]
        %v248 = vld [vmem:[#allocation4 + $0x40] sm:$0xff]
        %v249 = vld [vmem:[#allocation4 + $0x48] sm:$0xff]
        %v250 = vld [vmem:[#allocation4 + $0x50] sm:$0xff]
        %v251 = vld [vmem:[#allocation4 + $0x58] sm:$0xff]
        %v252 = vld [vmem:[#allocation4 + $0x60] sm:$0xff]
        %v253 = vld [vmem:[#allocation4 + $0x68] sm:$0xff]
        %v254 = vld [vmem:[#allocation4 + $0x70] sm:$0xff]
        %v255 = vld [vmem:[#allocation4 + $0x78] sm:$0xff]
        %v256 = vld [vmem:[%s2] sm:$0x1]
        %v258 = vlaneseq
        %v259 = vshrl.u32 %v258, 7
        %v260 = vsub.s32 0, %v259
        %v261 = vrot.slane %v256, %v260
        %263 = vmatprep.subr.mxu0 0.0
        %264 = vmatpush1.msra.mxu0 %v240
        %265 = vmatprep.subr.mxu0 0.0
        %266 = vmatpush1.msra.mxu0 %v241
        %267 = vmatprep.subr.mxu0 0.0
        %268 = vmatpush1.msra.mxu0 %v242
        %269 = vmatprep.subr.mxu0 0.0
        %270 = vmatpush1.msra.mxu0 %v243
        %271 = vmatprep.subr.mxu0 0.0
        %272 = vmatpush1.msra.mxu0 %v244
        %273 = vmatprep.subr.mxu0 0.0
        %274 = vmatpush1.msra.mxu0 %v245
        %275 = vmatprep.subr.mxu0 0.0
        %276 = vmatpush1.msra.mxu0 %v246
        %277 = vmatprep.subr.mxu0 0.0
        %278 = vmatpush1.msra.mxu0 %v247
        %279 = vmatprep.subr.mxu0 0.0
        %280 = vmatpush1.msra.mxu0 %v248
        %281 = vmatprep.subr.mxu0 0.0
        %282 = vmatpush1.msra.mxu0 %v249
        %283 = vmatprep.subr.mxu0 0.0
        %284 = vmatpush1.msra.mxu0 %v250
        %285 = vmatprep.subr.mxu0 0.0
        %286 = vmatpush1.msra.mxu0 %v251
        %287 = vmatprep.subr.mxu0 0.0
        %288 = vmatpush1.msra.mxu0 %v252
        %289 = vmatprep.subr.mxu0 0.0
        %290 = vmatpush1.msra.mxu0 %v253
        %291 = vmatprep.subr.mxu0 0.0
        %292 = vmatpush1.msra.mxu0 %v254
        %293 = vmatprep.subr.mxu0 0.0
        %294 = vmatpush1.msra.mxu0 %v255
        %295 = vmatprep.subr.mxu0 0.0
        %296 = vmatpush1.msra.mxu0 0.0
        %297 = vmatprep.subr.mxu0 0.0
        %298 = vmatpush1.msra.mxu0 0.0
        %299 = vmatprep.subr.mxu0 0.0
        %300 = vmatpush1.msra.mxu0 0.0
        %301 = vmatprep.subr.mxu0 0.0
        %302 = vmatpush1.msra.mxu0 0.0
        %303 = vmatprep.subr.mxu0 0.0
        %304 = vmatpush1.msra.mxu0 0.0
        %305 = vmatprep.subr.mxu0 0.0
        %306 = vmatpush1.msra.mxu0 0.0
        %307 = vmatprep.subr.mxu0 0.0
        %308 = vmatpush1.msra.mxu0 0.0
        %309 = vmatprep.subr.mxu0 0.0
        %310 = vmatpush1.msra.mxu0 0.0
        %311 = vmatprep.subr.mxu0 0.0
        %312 = vmatpush1.msra.mxu0 0.0
        %313 = vmatprep.subr.mxu0 0.0
        %314 = vmatpush1.msra.mxu0 0.0
        %315 = vmatprep.subr.mxu0 0.0
        %316 = vmatpush1.msra.mxu0 0.0
        %317 = vmatprep.subr.mxu0 0.0
        %318 = vmatpush1.msra.mxu0 0.0
        %319 = vmatprep.subr.mxu0 0.0
        %320 = vmatpush1.msra.mxu0 0.0
        %321 = vmatprep.subr.mxu0 0.0
        %322 = vmatpush1.msra.mxu0 0.0
        %323 = vmatprep.subr.mxu0 0.0
        %324 = vmatpush1.msra.mxu0 0.0
        %325 = vmatprep.subr.mxu0 0.0
        %326 = vmatpush1.msra.mxu0 0.0
        %327 = vmatprep.mubr.f32.mxu0 0.0
        %328 = vmatmul.mubr.f32.gmra.mrb[0].mxu0 %v238
        %v329 = vpop.f32.mrb[0].mxu0
        %v330 = vadd.f32 %v261, %v329
        %v331 = vpop.f32.mrb[0].mxu0
        %332 = vmatprep.mubr.f32.mxu0 0.0
        %333 = vmatmul.mubr.f32.gmra.mrb[0].mxu0 %v239
        %v334 = vpop.f32.mrb[0].mxu0
        %v335 = vadd.f32 %v261, %v334
        %v336 = vpop.f32.mrb[0].mxu0
        %337 = vdwg.mxu0
        %v338 = vmax.f32 %v330, 0.0
        %v339 = vmax.f32 %v335, 0.0
        %p340 = scmp.ne.s32.totalorder %s21, 1
        // Predicated region
        $region79: #{tpu_custom_call.1} parent=65 // pred_check
          %p341 = pneg %p340
        $region80: #{tpu_custom_call.1} parent=65 // pred_check_branch
          %343 = sbr.rel (%p341) target = $region82
        $region81: #{tpu_custom_call.1} parent=65 // pred_region
          %v344 = vld [vmem:[#allocation2] sm:$0x3]
          %v345 = vrot.slane %v338, 4
          %v346 = vadd.f32 %v338, %v345
          %v347 = vrot.slane %v346, 2
          %v348 = vadd.f32 %v346, %v347
          %v349 = vrot.slane %v348, 1
          %v350 = vadd.f32 %v348, %v349
          %v351 = vrot.slane %v339, 4
          %v352 = vadd.f32 %v339, %v351
          %v353 = vrot.slane %v352, 2
          %v354 = vadd.f32 %v352, %v353
          %v355 = vrot.slane %v354, 1
          %v356 = vadd.f32 %v354, %v355
          %vm359 = vcmask 1041409
          %v360 = vsel %vm359, %v356, %v350
          %v362 = vadd.f32 %v344, %v360
          %363 = vst [vmem:[#allocation2] sm:$0x3] %v362
        $region82: #{tpu_custom_call.1} parent=65 // pred_fallthru
          _
        %p364 = scmp.eq.s32.totalorder %s21, 1
        // Predicated region
        $region83: #{tpu_custom_call.1} parent=65 // pred_check
          %p365 = pneg %p364
        $region84: #{tpu_custom_call.1} parent=65 // pred_check_branch
          %367 = sbr.rel (%p365) target = $region86
        $region85: #{tpu_custom_call.1} parent=65 // pred_region
          %v368 = vlaneseq
          %v369 = vshrl.u32 %v368, 7
          %s370 = smul.u32 %s21, 8
          %v371 = vstv %s370
          %v372 = vadd.s32 %v371, %v369
          %vm373 = vcmp.lt.s32.totalorder %v372, 12
          %v374 = vld [vmem:[#allocation2] sm:$0x3]
          %v375 = vsel %vm373, 1, 0
          %vm376 = vcmp.eq.s32.totalorder %v375, 1
          %v377 = vsel %vm376, %v338, 0.0
          %v378 = vsel %vm376, %v339, 0.0
          %v379 = vrot.slane %v377, 4
          %v380 = vadd.f32 %v377, %v379
          %v381 = vrot.slane %v380, 2
          %v382 = vadd.f32 %v380, %v381
          %v383 = vrot.slane %v382, 1
          %v384 = vadd.f32 %v382, %v383
          %v385 = vrot.slane %v378, 4
          %v386 = vadd.f32 %v378, %v385
          %v387 = vrot.slane %v386, 2
          %v388 = vadd.f32 %v386, %v387
          %v389 = vrot.slane %v388, 1
          %v390 = vadd.f32 %v388, %v389
          %vm393 = vcmask 1041409
          %v394 = vsel %vm393, %v390, %v384
          %v396 = vadd.f32 %v374, %v394
          %397 = vst [vmem:[#allocation2] sm:$0x3] %v396
          %v398 = vld [vmem:[#allocation2] sm:$0x3]
          %v399 = vmul.f32 %v398, 0.083333336
          %400 = vst [vmem:[#allocation7] sm:$0x3] %v399
        $region86: #{tpu_custom_call.1} parent=65 // pred_fallthru
          _
        // Predicated region
        $region87: #{tpu_custom_call.1} parent=65 // pred_check
          %p401 = pneg %p116
        $region88: #{tpu_custom_call.1} parent=65 // pred_check_branch
          %403 = sbr.rel (%p401) target = $region90
        $region89: #{tpu_custom_call.1} parent=65 // pred_region
          %s405 = ssub.s32 32, 32
          %406 = vsyncadd [#allocation6], %s405
          %s407 = smul.addr %s20, 32
          %s408 = scalar_lea.hbm %s3, %s407
          %s410 = sshll.u32 [#allocation7], 4
          %s411 = int_to_ptr.vmem [resolvable:$true] %s410
          %413 = dma.vmem_to_hbm [thread:$0]  %s411, 32, %s408, [#allocation6]
        $region90: #{tpu_custom_call.1} parent=65 // pred_fallthru
          _
        // Predicated region
        $region91: #{tpu_custom_call.1} parent=65 // pred_check
          %p414 = pneg %p116
        $region92: #{tpu_custom_call.1} parent=65 // pred_check_branch
          %416 = sbr.rel (%p414) target = $region94
        $region93: #{tpu_custom_call.1} parent=65 // pred_region
          %417 = dma.done [#allocation6], 32
        $region94: #{tpu_custom_call.1} parent=65 // pred_fallthru
          _
      $region66: #{tpu_custom_call.1} parent=5 // pred_fallthru
        _
      %p418 = scmp.le.s32.totalorder 2, %s11
      // Predicated region
      $region95: #{tpu_custom_call.1} parent=5 // pred_check
        %p419 = pneg %p418
      $region96: #{tpu_custom_call.1} parent=5 // pred_check_branch
        %421 = sbr.rel (%p419) target = $region98
      $region97: #{tpu_custom_call.1} parent=5 // pred_region
        %s422 = ssub.s32 %s11, 2
      $region98: #{tpu_custom_call.1} parent=5 // pred_fallthru
        _
    $region6: #{tpu_custom_call.1} parent=1 // loop_footer
      %s15 = sadd.s32 1, %s11
    $region7: #{tpu_custom_call.1} parent=1 // loop_footer_branch
      %10 = sbr.rel target = $region3
    $region8: #{tpu_custom_call.1} parent=1 // loop_exit
      _
    %423 = vsyncpa [#allocation5], 1
    %s424 = scalar_lea.sflag [#allocation5], 1
    %425 = vsyncpa %s424, 1
    %426 = vsyncpa [#allocation6], 1
    %s427 = scalar_lea.sflag [#allocation6], 1
    %428 = vsyncpa %s427, 1

</llo_original>
